<compile_context>
chip_gen: v7x
topology: tpu7x:2x2x1
jax: 0.10.0
libtpu: 0.0.40
codegen_flags: <defaults>
</compile_context>

<pallas_src>
import functools

import jax
import jax.numpy as jnp
from jax.experimental import pallas as pl
from jax.experimental.pallas import tpu as pltpu


def _round_up(x, m):
    return ((x + m - 1) // m) * m


def _swin_combined_loss_kernel(orig_logits_ref, orig_labels_ref,
                               large_logits_ref, large_labels_ref,
                               small_logits_ref, small_labels_ref,
                               out_ref, *,
                               w_large, w_small, w_orig,
                               valid_rows, has_padding):
    # One iota per distinct class count, shared across the three streams.
    iotas = {}

    def per_row_nll(logits_ref, labels_ref):
        x = logits_ref[...]                                   # [TB, C] native dtype
        lab = labels_ref[...].astype(jnp.int32)               # [TB, 1]
        c = x.shape[-1]
        if c not in iotas:
            iotas[c] = jax.lax.broadcasted_iota(jnp.int32, x.shape, 1)
        col = iotas[c]
        # max and label-pick are exact in the native dtype (bf16 vregs hold 2x).
        m = jnp.max(x, axis=-1, keepdims=True)                # [TB, 1] native
        picked = jnp.sum(jnp.where(col == lab, x, jnp.zeros_like(x)),
                         axis=-1, keepdims=True)              # exact: one nonzero/row
        # f32 only for the exp / log-sum-exp path (accuracy-critical).
        xf = x.astype(jnp.float32)
        mf = m.astype(jnp.float32)
        lse = mf + jnp.log(jnp.sum(jnp.exp(xf - mf), axis=-1, keepdims=True))
        return lse - picked.astype(jnp.float32)                # [TB, 1] f32

    pr_o = per_row_nll(orig_logits_ref, orig_labels_ref)
    pr_l = per_row_nll(large_logits_ref, large_labels_ref)
    pr_s = per_row_nll(small_logits_ref, small_labels_ref)

    # Fuse the three streams BEFORE the cross-sublane reduction; the 1/B of
    # each CrossEntropyLoss mean is already folded into the weights.
    weighted = (jnp.float32(w_large) * pr_l
                + jnp.float32(w_small) * pr_s
                + jnp.float32(w_orig) * pr_o)                  # [TB, 1] f32

    if has_padding:
        # Ragged last tile: rows >= valid_rows contain garbage (stale VMEM /
        # out-of-bounds reads).  jnp.where SELECTS, so NaN/Inf in those rows is
        # safe; do not replace with a multiplicative mask.
        tb = weighted.shape[0]
        row0 = pl.program_id(0) * tb
        row_ids = row0 + jax.lax.broadcasted_iota(jnp.int32, (tb, 1), 0)
        weighted = jnp.where(row_ids < valid_rows, weighted, 0.0)

    partial = jnp.sum(weighted)                                # scalar f32
    # Lane-dense (unmasked vst) store of the per-tile partial sum; the wrapper
    # reads [:, 0, 0] and finishes the reduction.
    out_ref[...] = jnp.full(out_ref.shape, partial, dtype=jnp.float32)


def _vmem_config():
    """(working-set budget, vmem_limit_bytes) gated per TPU generation."""
    cap = None
    try:
        cap = int(getattr(pltpu.get_tpu_info(), "vmem_capacity_bytes", 0))
    except Exception:
        cap = None
    if not cap:
        cap = 64 * 1024 * 1024                      # conservative: assume v7x-class
    if cap >= 100 * 1024 * 1024:                    # v5e / v6e (128 MiB physical)
        return 36 * 1024 * 1024, 96 * 1024 * 1024
    return 18 * 1024 * 1024, 44 * 1024 * 1024       # v7x-class (64 MiB physical)


def _choose_tile(b, logits, budget):
    """Batch-tile size: multiple of 32, >= ~8 grid steps, within VMEM budget."""
    if b <= 32:
        return b                                    # full-dim block is always legal
    # Per-row VMEM bytes actually live at once:
    #   * double-buffered native logit tiles (pipeline buffers)
    #   * ~6x f32 bytes / element of compiler intermediates (upcast, exp, iota,
    #     compare/select, partial reductions)
    #   * lane-padded (TB, 128) int32 label tiles, double-buffered, x3 streams
    row_bytes = 0
    for x in logits:
        c = x.shape[1]
        row_bytes += 2 * c * x.dtype.itemsize
        row_bytes += 6 * c * 4
    row_bytes += 3 * 2 * 128 * 4
    tb_vmem = max(32, (budget // max(row_bytes, 1)) // 32 * 32)
    tb_tiles = max(32, _round_up(pl.cdiv(b, 8), 32))    # target >= ~8 tiles
    tb = min(1024, tb_vmem, tb_tiles, _round_up(b, 32))
    return tb


def swin_combined_loss(original_output, original_label,
                       large_output, large_label,
                       small_output, small_label,
                       large_loss_weight=0.5,
                       small_loss_weight=0.3,
                       original_loss_weight=0.2):
    """Weighted sum of three mean-reduced cross-entropy losses (scalar f32)."""
    logits = (original_output, large_output, small_output)
    labels = (original_label, large_label, small_label)
    b = original_output.shape[0]
    assert all(x.shape[0] == b for x in logits) and all(l.shape[0] == b for l in labels), \
        "all streams must share the same batch size (1/B is folded into the weights)"

    budget, vmem_limit = _vmem_config()
    tb = _choose_tile(b, logits, budget)
    num_tiles = pl.cdiv(b, tb)
    has_padding = (b % tb) != 0                 # ragged last tile handled in-kernel

    # Logits keep their native dtype (no wrapper upcast, no wrapper pad).
    # Labels -> int32 [B, 1].
    label_args = tuple(l.astype(jnp.int32).reshape(-1, 1) for l in labels)

    kernel = functools.partial(
        _swin_combined_loss_kernel,
        w_large=float(large_loss_weight) / b,
        w_small=float(small_loss_weight) / b,
        w_orig=float(original_loss_weight) / b,
        valid_rows=b,
        has_padding=has_padding)

    args = []
    in_specs = []
    for lg, lb in zip(logits, label_args):
        args.append(lg)
        in_specs.append(pl.BlockSpec((tb, lg.shape[1]), lambda i: (i, 0)))
        args.append(lb)
        in_specs.append(pl.BlockSpec((tb, 1), lambda i: (i, 0)))

    partials = pl.pallas_call(
        kernel,
        out_shape=jax.ShapeDtypeStruct((num_tiles, 8, 128), jnp.float32),
        grid_spec=pltpu.PrefetchScalarGridSpec(
            num_scalar_prefetch=0,
            grid=(num_tiles,),
            in_specs=in_specs,
            out_specs=pl.BlockSpec((1, 8, 128), lambda i: (i, 0, 0)),
            scratch_shapes=[],
        ),
        compiler_params=pltpu.CompilerParams(
            dimension_semantics=("parallel",),      # independent per-tile partials
            vmem_limit_bytes=vmem_limit),
    )(*args)

    # Tiny final reduction over per-tile partials (lane 0 of each block).
    return jnp.sum(partials[:, 0, 0])


def _reference_loss(oo, olab, lo, llab, so, slab, lw, sw, ow):
    # TODO(synk): only nn.CrossEntropyLoss defaults (mean reduction, no
    # ignore_index / label smoothing) are implemented, matching the module.
    def ce(logits, lab):
        logp = jax.nn.log_softmax(logits.astype(jnp.float32), axis=-1)
        nll = -jnp.take_along_axis(logp, lab[:, None].astype(jnp.int32), axis=-1)
        return jnp.mean(nll)
    return lw * ce(lo, llab) + sw * ce(so, slab) + ow * ce(oo, olab)


if __name__ == "__main__":
    key = jax.random.PRNGKey(0)
    k = jax.random.split(key, 6)

    B, C = 8, 16  # small synthetic shapes: batch=8, num_classes=16

    # Native bf16 logits (exercises the native-dtype DMA + in-kernel upcast path).
    original_output = jax.random.normal(k[0], (B, C), dtype=jnp.float32).astype(jnp.bfloat16)
    large_output = jax.random.normal(k[1], (B, C), dtype=jnp.float32).astype(jnp.bfloat16)
    small_output = jax.random.normal(k[2], (B, C), dtype=jnp.float32).astype(jnp.bfloat16)
    original_label = jax.random.randint(k[3], (B,), 0, C, dtype=jnp.int32)
    large_label = jax.random.randint(k[4], (B,), 0, C, dtype=jnp.int32)
    small_label = jax.random.randint(k[5], (B,), 0, C, dtype=jnp.int32)

    loss = swin_combined_loss(original_output, original_label,
                              large_output, large_label,
                              small_output, small_label)
    loss = jax.block_until_ready(loss)

    ref = _reference_loss(original_output, original_label,
                          large_output, large_label,
                          small_output, small_label,
                          0.5, 0.3, 0.2)
    assert jnp.allclose(loss, ref, rtol=1e-5, atol=1e-5), (loss, ref)
    print("KERNEL_OK")
</pallas_src>

<mosaic_0001>
module attributes {stable_mosaic.version = 11 : i64} {
  func.func @_swin_combined_loss_kernel(%arg0: i32, %arg1: memref<8x16xbf16, #tpu.memory_space<vmem>>, %arg2: memref<8x1xi32, #tpu.memory_space<vmem>>, %arg3: memref<8x16xbf16, #tpu.memory_space<vmem>>, %arg4: memref<8x1xi32, #tpu.memory_space<vmem>>, %arg5: memref<8x16xbf16, #tpu.memory_space<vmem>>, %arg6: memref<8x1xi32, #tpu.memory_space<vmem>>, %arg7: memref<1x8x128xf32, #tpu.memory_space<vmem>>) attributes {dimension_semantics = [#tpu.dimension_semantics<parallel>], iteration_bounds = array<i64: 1>, scalar_prefetch = 0 : i64, scratch_operands = 0 : i64, tpu.core_type = #tpu.core_type<tc>, window_params = [{transform_indices = @transform_0, window_bounds = array<i64: 8, 16>}, {transform_indices = @transform_1, window_bounds = array<i64: 8, 1>}, {transform_indices = @transform_2, window_bounds = array<i64: 8, 16>}, {transform_indices = @transform_3, window_bounds = array<i64: 8, 1>}, {transform_indices = @transform_4, window_bounds = array<i64: 8, 16>}, {transform_indices = @transform_5, window_bounds = array<i64: 8, 1>}, {transform_indices = @transform_6, window_bounds = array<i64: 1, 8, 128>}]} {
    %c0 = arith.constant 0 : index
    %c0_0 = arith.constant 0 : index
    %0 = vector.load %arg1[%c0, %c0_0] : memref<8x16xbf16, #tpu.memory_space<vmem>>, vector<8x16xbf16>
    %c0_1 = arith.constant 0 : index
    %c0_2 = arith.constant 0 : index
    %1 = vector.load %arg2[%c0_1, %c0_2] : memref<8x1xi32, #tpu.memory_space<vmem>>, vector<8x1xi32>
    %2 = tpu.iota {dimensions = array<i32: 1>} : vector<8x16xi32>
    %cst = arith.constant dense<0xFF80> : vector<8xbf16>
    %3 = vector.multi_reduction <maximumf>, %0, %cst [1] : vector<8x16xbf16> to vector<8xbf16>
    %4 = vector.shape_cast %3 : vector<8xbf16> to vector<8x1xbf16>
    %5 = vector.broadcast %1 : vector<8x1xi32> to vector<8x16xi32>
    %6 = arith.cmpi eq, %2, %5 : vector<8x16xi32>
    %cst_3 = arith.constant 0.000000e+00 : bf16
    %7 = vector.broadcast %cst_3 : bf16 to vector<8x16xbf16>
    %8 = arith.select %6, %0, %7 : vector<8x16xi1>, vector<8x16xbf16>
    %9 = arith.extf %8 : vector<8x16xbf16> to vector<8x16xf32>
    %cst_4 = arith.constant dense<0.000000e+00> : vector<8xf32>
    %10 = vector.multi_reduction <add>, %9, %cst_4 [1] : vector<8x16xf32> to vector<8xf32>
    %11 = vector.shape_cast %10 : vector<8xf32> to vector<8x1xf32>
    %12 = arith.truncf %11 : vector<8x1xf32> to vector<8x1xbf16>
    %13 = arith.extf %0 : vector<8x16xbf16> to vector<8x16xf32>
    %14 = arith.extf %4 : vector<8x1xbf16> to vector<8x1xf32>
    %15 = vector.broadcast %14 : vector<8x1xf32> to vector<8x16xf32>
    %16 = arith.subf %13, %15 : vector<8x16xf32>
    %17 = math.exp %16 : vector<8x16xf32>
    %cst_5 = arith.constant dense<0.000000e+00> : vector<8xf32>
    %18 = vector.multi_reduction <add>, %17, %cst_5 [1] : vector<8x16xf32> to vector<8xf32>
    %19 = vector.shape_cast %18 : vector<8xf32> to vector<8x1xf32>
    %20 = math.log %19 : vector<8x1xf32>
    %21 = arith.addf %14, %20 : vector<8x1xf32>
    %22 = arith.extf %12 : vector<8x1xbf16> to vector<8x1xf32>
    %23 = arith.subf %21, %22 : vector<8x1xf32>
    %c0_6 = arith.constant 0 : index
    %c0_7 = arith.constant 0 : index
    %24 = vector.load %arg3[%c0_6, %c0_7] : memref<8x16xbf16, #tpu.memory_space<vmem>>, vector<8x16xbf16>
    %c0_8 = arith.constant 0 : index
    %c0_9 = arith.constant 0 : index
    %25 = vector.load %arg4[%c0_8, %c0_9] : memref<8x1xi32, #tpu.memory_space<vmem>>, vector<8x1xi32>
    %cst_10 = arith.constant dense<0xFF80> : vector<8xbf16>
    %26 = vector.multi_reduction <maximumf>, %24, %cst_10 [1] : vector<8x16xbf16> to vector<8xbf16>
    %27 = vector.shape_cast %26 : vector<8xbf16> to vector<8x1xbf16>
    %28 = vector.broadcast %25 : vector<8x1xi32> to vector<8x16xi32>
    %29 = arith.cmpi eq, %2, %28 : vector<8x16xi32>
    %cst_11 = arith.constant 0.000000e+00 : bf16
    %30 = vector.broadcast %cst_11 : bf16 to vector<8x16xbf16>
    %31 = arith.select %29, %24, %30 : vector<8x16xi1>, vector<8x16xbf16>
    %32 = arith.extf %31 : vector<8x16xbf16> to vector<8x16xf32>
    %cst_12 = arith.constant dense<0.000000e+00> : vector<8xf32>
    %33 = vector.multi_reduction <add>, %32, %cst_12 [1] : vector<8x16xf32> to vector<8xf32>
    %34 = vector.shape_cast %33 : vector<8xf32> to vector<8x1xf32>
    %35 = arith.truncf %34 : vector<8x1xf32> to vector<8x1xbf16>
    %36 = arith.extf %24 : vector<8x16xbf16> to vector<8x16xf32>
    %37 = arith.extf %27 : vector<8x1xbf16> to vector<8x1xf32>
    %38 = vector.broadcast %37 : vector<8x1xf32> to vector<8x16xf32>
    %39 = arith.subf %36, %38 : vector<8x16xf32>
    %40 = math.exp %39 : vector<8x16xf32>
    %cst_13 = arith.constant dense<0.000000e+00> : vector<8xf32>
    %41 = vector.multi_reduction <add>, %40, %cst_13 [1] : vector<8x16xf32> to vector<8xf32>
    %42 = vector.shape_cast %41 : vector<8xf32> to vector<8x1xf32>
    %43 = math.log %42 : vector<8x1xf32>
    %44 = arith.addf %37, %43 : vector<8x1xf32>
    %45 = arith.extf %35 : vector<8x1xbf16> to vector<8x1xf32>
    %46 = arith.subf %44, %45 : vector<8x1xf32>
    %c0_14 = arith.constant 0 : index
    %c0_15 = arith.constant 0 : index
    %47 = vector.load %arg5[%c0_14, %c0_15] : memref<8x16xbf16, #tpu.memory_space<vmem>>, vector<8x16xbf16>
    %c0_16 = arith.constant 0 : index
    %c0_17 = arith.constant 0 : index
    %48 = vector.load %arg6[%c0_16, %c0_17] : memref<8x1xi32, #tpu.memory_space<vmem>>, vector<8x1xi32>
    %cst_18 = arith.constant dense<0xFF80> : vector<8xbf16>
    %49 = vector.multi_reduction <maximumf>, %47, %cst_18 [1] : vector<8x16xbf16> to vector<8xbf16>
    %50 = vector.shape_cast %49 : vector<8xbf16> to vector<8x1xbf16>
    %51 = vector.broadcast %48 : vector<8x1xi32> to vector<8x16xi32>
    %52 = arith.cmpi eq, %2, %51 : vector<8x16xi32>
    %cst_19 = arith.constant 0.000000e+00 : bf16
    %53 = vector.broadcast %cst_19 : bf16 to vector<8x16xbf16>
    %54 = arith.select %52, %47, %53 : vector<8x16xi1>, vector<8x16xbf16>
    %55 = arith.extf %54 : vector<8x16xbf16> to vector<8x16xf32>
    %cst_20 = arith.constant dense<0.000000e+00> : vector<8xf32>
    %56 = vector.multi_reduction <add>, %55, %cst_20 [1] : vector<8x16xf32> to vector<8xf32>
    %57 = vector.shape_cast %56 : vector<8xf32> to vector<8x1xf32>
    %58 = arith.truncf %57 : vector<8x1xf32> to vector<8x1xbf16>
    %59 = arith.extf %47 : vector<8x16xbf16> to vector<8x16xf32>
    %60 = arith.extf %50 : vector<8x1xbf16> to vector<8x1xf32>
    %61 = vector.broadcast %60 : vector<8x1xf32> to vector<8x16xf32>
    %62 = arith.subf %59, %61 : vector<8x16xf32>
    %63 = math.exp %62 : vector<8x16xf32>
    %cst_21 = arith.constant dense<0.000000e+00> : vector<8xf32>
    %64 = vector.multi_reduction <add>, %63, %cst_21 [1] : vector<8x16xf32> to vector<8xf32>
    %65 = vector.shape_cast %64 : vector<8xf32> to vector<8x1xf32>
    %66 = math.log %65 : vector<8x1xf32>
    %67 = arith.addf %60, %66 : vector<8x1xf32>
    %68 = arith.extf %58 : vector<8x1xbf16> to vector<8x1xf32>
    %69 = arith.subf %67, %68 : vector<8x1xf32>
    %cst_22 = arith.constant 6.250000e-02 : f32
    %70 = vector.broadcast %cst_22 : f32 to vector<8x1xf32>
    %71 = arith.mulf %70, %46 : vector<8x1xf32>
    %cst_23 = arith.constant 3.750000e-02 : f32
    %72 = vector.broadcast %cst_23 : f32 to vector<8x1xf32>
    %73 = arith.mulf %72, %69 : vector<8x1xf32>
    %74 = arith.addf %71, %73 : vector<8x1xf32>
    %cst_24 = arith.constant 2.500000e-02 : f32
    %75 = vector.broadcast %cst_24 : f32 to vector<8x1xf32>
    %76 = arith.mulf %75, %23 : vector<8x1xf32>
    %77 = arith.addf %74, %76 : vector<8x1xf32>
    %78 = vector.shape_cast %77 : vector<8x1xf32> to vector<1x8x1xf32>
    %cst_25 = arith.constant dense<0.000000e+00> : vector<1xf32>
    %79 = vector.multi_reduction <add>, %78, %cst_25 [1, 2] : vector<1x8x1xf32> to vector<1xf32>
    %80 = vector.shape_cast %79 : vector<1xf32> to vector<1x1x1xf32>
    %81 = vector.extract %80[0, 0, 0] : f32 from vector<1x1x1xf32>
    %82 = vector.broadcast %81 : f32 to vector<1x8x128xf32>
    %c0_26 = arith.constant 0 : index
    %c0_27 = arith.constant 0 : index
    %c0_28 = arith.constant 0 : index
    %83 = vector.load %arg7[%c0_26, %c0_27, %c0_28] : memref<1x8x128xf32, #tpu.memory_space<vmem>>, vector<1x8x128xf32>
    tpu.vector_store %arg7[%c0_26, %c0_27, %c0_28], %82 {strides = array<i32>} : memref<1x8x128xf32, #tpu.memory_space<vmem>>, vector<1x8x128xf32>,
    return
  }
  func.func @transform_0(%arg0: i32) -> (i32, i32) {
    %c0_i32 = arith.constant 0 : i32
    %c0_i32_0 = arith.constant 0 : i32
    return %arg0, %c0_i32 : i32, i32
  }
  func.func @transform_1(%arg0: i32) -> (i32, i32) {
    %c0_i32 = arith.constant 0 : i32
    %c0_i32_0 = arith.constant 0 : i32
    return %arg0, %c0_i32 : i32, i32
  }
  func.func @transform_2(%arg0: i32) -> (i32, i32) {
    %c0_i32 = arith.constant 0 : i32
    %c0_i32_0 = arith.constant 0 : i32
    return %arg0, %c0_i32 : i32, i32
  }
  func.func @transform_3(%arg0: i32) -> (i32, i32) {
    %c0_i32 = arith.constant 0 : i32
    %c0_i32_0 = arith.constant 0 : i32
    return %arg0, %c0_i32 : i32, i32
  }
  func.func @transform_4(%arg0: i32) -> (i32, i32) {
    %c0_i32 = arith.constant 0 : i32
    %c0_i32_0 = arith.constant 0 : i32
    return %arg0, %c0_i32 : i32, i32
  }
  func.func @transform_5(%arg0: i32) -> (i32, i32) {
    %c0_i32 = arith.constant 0 : i32
    %c0_i32_0 = arith.constant 0 : i32
    return %arg0, %c0_i32 : i32, i32
  }
  func.func @transform_6(%arg0: i32) -> (i32, i32, i32) {
    %c0_i32 = arith.constant 0 : i32
    %c0_i32_0 = arith.constant 0 : i32
    %c0_i32_1 = arith.constant 0 : i32
    return %arg0, %c0_i32, %c0_i32_0 : i32, i32, i32
  }
}

</mosaic_0001>

<llo_original>
// kernel: tpu_custom_call.1
$region0: #{tpu_custom_call.1}
  #allocation0 [shape = 'u32[]', space=smem, size = 0x4, offset = 0x4, fixed_abs, tag = 'smem constant byte address 0x4 - core index']
  #allocation1 [shape = 'u32[144,128]{1,0:T(1,128)}', space=vmem, size = 0x12000, scoped, tag = 'internal scratch']
  %s0 = inlined_call_operand.vmem [shape: bf16[8,16], index: 0, kind: input, shape index: {}]
  %s1 = inlined_call_operand.vmem [shape: s32[8,1], index: 1, kind: input, shape index: {}]
  %s2 = inlined_call_operand.vmem [shape: bf16[8,16], index: 2, kind: input, shape index: {}]
  %s3 = inlined_call_operand.vmem [shape: s32[8,1], index: 3, kind: input, shape index: {}]
  %s4 = inlined_call_operand.vmem [shape: bf16[8,16], index: 4, kind: input, shape index: {}]
  %s5 = inlined_call_operand.vmem [shape: s32[8,1], index: 5, kind: input, shape index: {}]
  %s6 = inlined_call_operand.hbm [shape: f32[1,8,128], index: 6, kind: output, shape index: {}]
  %s7 = sld [smem:[#allocation0]]
  $region34: #{tpu_custom_call.1} parent=0
    _
  %s9 = ssub.s32 1, %s7
  %s10 = scalar_select 0, %s9, %s7
  $region1: #{tpu_custom_call.1} parent=0
    #allocation2 [shape = 'u8[4096]{0}', space=vmem, size = 0x1000, scoped, tag = 'output window, operand 0, single buffered']
    #allocation3 [shape = 's32[1]{0}', space=sflag, size = 0x4, scoped, tag = 'scoped memory for tpu_custom_call.1']
    %11 = vsyncpa [#allocation3], 0
    // Predicated region
    $region2: #{tpu_custom_call.1} parent=1 // pred_check
      _
    $region3: #{tpu_custom_call.1} parent=1 // pred_check_branch
      %13 = sbr.rel (0) target = $region5
    $region4: #{tpu_custom_call.1} parent=1 // pred_region
      _
    $region5: #{tpu_custom_call.1} parent=1 // pred_fallthru
      _
    // Predicated region
    $region6: #{tpu_custom_call.1} parent=1 // pred_check
      _
    $region7: #{tpu_custom_call.1} parent=1 // pred_check_branch
      %15 = sbr.rel (0) target = $region9
    $region8: #{tpu_custom_call.1} parent=1 // pred_region
      _
    $region9: #{tpu_custom_call.1} parent=1 // pred_fallthru
      _
    // Predicated region
    $region10: #{tpu_custom_call.1} parent=1 // pred_check
      _
    $region11: #{tpu_custom_call.1} parent=1 // pred_check_branch
      %17 = sbr.rel (0) target = $region13
    $region12: #{tpu_custom_call.1} parent=1 // pred_region
      _
    $region13: #{tpu_custom_call.1} parent=1 // pred_fallthru
      _
    // Predicated region
    $region14: #{tpu_custom_call.1} parent=1 // pred_check
      _
    $region15: #{tpu_custom_call.1} parent=1 // pred_check_branch
      %19 = sbr.rel (0) target = $region17
    $region16: #{tpu_custom_call.1} parent=1 // pred_region
      _
    $region17: #{tpu_custom_call.1} parent=1 // pred_fallthru
      _
    // Predicated region
    $region18: #{tpu_custom_call.1} parent=1 // pred_check
      _
    $region19: #{tpu_custom_call.1} parent=1 // pred_check_branch
      %21 = sbr.rel (0) target = $region21
    $region20: #{tpu_custom_call.1} parent=1 // pred_region
      _
    $region21: #{tpu_custom_call.1} parent=1 // pred_fallthru
      _
    // Predicated region
    $region22: #{tpu_custom_call.1} parent=1 // pred_check
      _
    $region23: #{tpu_custom_call.1} parent=1 // pred_check_branch
      %23 = sbr.rel (0) target = $region25
    $region24: #{tpu_custom_call.1} parent=1 // pred_region
      _
    $region25: #{tpu_custom_call.1} parent=1 // pred_fallthru
      _
    %v26 = vld [vmem:[%s0] sm:$0xf]
    %v27 = vld [vmem:[%s1] sm:$0xff]
    %v28 = vlaneseq
    %v29 = vand.u32 %v28, 127
    %vm30 = vcmask 125952
    %v33 = vsel %vm30, %v26, 4286644096
    %35 = vmax.xlane.bf16.xlu0 %v33
    %v36 = vpop.xlane.xlu0 %35
    %37 = vset.pattern.permute.xlu0 0
    %38 = vperm.xlu0 %37, %v27
    %v39 = vpop.permute.xlu0 %38
    %vm40 = vcmp.eq.s32.totalorder %v29, %v39
    %vm41 = vmpackc.low %vm40, %vm40
    %v42 = vsel %vm41, %v26, 0
    %v43 = vunpack.c.l.bf16 %v42
    %vm44 = vcmask 130048
    %v45 = vsel %vm44, %v43, 0.0
    %46 = vadd.xlane.f32.xlu0 %v45
    %v47 = vpop.xlane.xlu0 %46
    %v48 = vpack.c.bf16 %v47, %v47
    %v49 = vunpack.c.l.bf16 %v26
    %v50 = vunpack.c.l.bf16 %v36
    %v51 = vsub.f32 %v49, %v50
    %v52 = vmul.f32 %v51, 1.442695
    %v53 = vpow.pop %v52
    %v54 = vsel %vm44, %v53, 0.0
    %55 = vadd.xlane.f32.xlu0 %v54
    %v56 = vpop.xlane.xlu0 %55
    %v57 = vlog2.pop %v56
    %v58 = vmul.f32 %v57, 0.6931472
    %v59 = vadd.f32 %v50, %v58
    %v60 = vunpack.c.l.bf16 %v48
    %v61 = vsub.f32 %v59, %v60
    %v62 = vld [vmem:[%s2] sm:$0xf]
    %v63 = vld [vmem:[%s3] sm:$0xff]
    %v65 = vsel %vm30, %v62, 4286644096
    %67 = vmax.xlane.bf16.xlu0 %v65
    %v68 = vpop.xlane.xlu0 %67
    %69 = vset.pattern.permute.xlu0 0
    %70 = vperm.xlu0 %69, %v63
    %v71 = vpop.permute.xlu0 %70
    %vm72 = vcmp.eq.s32.totalorder %v29, %v71
    %vm73 = vmpackc.low %vm72, %vm72
    %v74 = vsel %vm73, %v62, 0
    %v75 = vunpack.c.l.bf16 %v74
    %v76 = vsel %vm44, %v75, 0.0
    %77 = vadd.xlane.f32.xlu0 %v76
    %v78 = vpop.xlane.xlu0 %77
    %v79 = vpack.c.bf16 %v78, %v78
    %v80 = vunpack.c.l.bf16 %v62
    %v81 = vunpack.c.l.bf16 %v68
    %v82 = vsub.f32 %v80, %v81
    %v83 = vmul.f32 %v82, 1.442695
    %v84 = vpow.pop %v83
    %v85 = vsel %vm44, %v84, 0.0
    %86 = vadd.xlane.f32.xlu0 %v85
    %v87 = vpop.xlane.xlu0 %86
    %v88 = vlog2.pop %v87
    %v89 = vmul.f32 %v88, 0.6931472
    %v90 = vadd.f32 %v81, %v89
    %v91 = vunpack.c.l.bf16 %v79
    %v92 = vsub.f32 %v90, %v91
    %v93 = vld [vmem:[%s4] sm:$0xf]
    %v94 = vld [vmem:[%s5] sm:$0xff]
    %v96 = vsel %vm30, %v93, 4286644096
    %98 = vmax.xlane.bf16.xlu0 %v96
    %v99 = vpop.xlane.xlu0 %98
    %100 = vset.pattern.permute.xlu0 0
    %101 = vperm.xlu0 %100, %v94
    %v102 = vpop.permute.xlu0 %101
    %vm103 = vcmp.eq.s32.totalorder %v29, %v102
    %vm104 = vmpackc.low %vm103, %vm103
    %v105 = vsel %vm104, %v93, 0
    %v106 = vunpack.c.l.bf16 %v105
    %v107 = vsel %vm44, %v106, 0.0
    %108 = vadd.xlane.f32.xlu0 %v107
    %v109 = vpop.xlane.xlu0 %108
    %v110 = vpack.c.bf16 %v109, %v109
    %v111 = vunpack.c.l.bf16 %v93
    %v112 = vunpack.c.l.bf16 %v99
    %v113 = vsub.f32 %v111, %v112
    %v114 = vmul.f32 %v113, 1.442695
    %v115 = vpow.pop %v114
    %v116 = vsel %vm44, %v115, 0.0
    %117 = vadd.xlane.f32.xlu0 %v116
    %v118 = vpop.xlane.xlu0 %117
    %v119 = vlog2.pop %v118
    %v120 = vmul.f32 %v119, 0.6931472
    %v121 = vadd.f32 %v112, %v120
    %v122 = vunpack.c.l.bf16 %v110
    %v123 = vsub.f32 %v121, %v122
    %v124 = vmul.f32 %v92, 0.0625
    %v125 = vmul.f32 %v123, 0.0375
    %v126 = vadd.f32 %v124, %v125
    %v127 = vmul.f32 %v61, 0.025
    %v128 = vadd.f32 %v126, %v127
    %vm129 = vcmask 7168
    %v130 = vsel %vm129, %v128, 0.0
    %131 = vadd.xlane.f32.xlu0 %v130
    %v132 = vpop.xlane.xlu0 %131
    %v133 = vrot.slane %v132, 4
    %v134 = vadd.f32 %v132, %v133
    %v135 = vrot.slane %v134, 2
    %v136 = vadd.f32 %v134, %v135
    %v137 = vrot.slane %v136, 1
    %v138 = vadd.f32 %v136, %v137
    %s139 = vtos %v138
    %v140 = vstv %s139
    %141 = vst [vmem:[#allocation2] sm:$0xff] %v140
    // Predicated region
    $region26: #{tpu_custom_call.1} parent=1 // pred_check
      _
    $region27: #{tpu_custom_call.1} parent=1 // pred_check_branch
      %143 = sbr.rel (0) target = $region29
    $region28: #{tpu_custom_call.1} parent=1 // pred_region
      %s145 = ssub.s32 128, 128
      %146 = vsyncadd [#allocation3], %s145
      %s148 = sshll.u32 [#allocation2], 4
      %s149 = int_to_ptr.vmem [resolvable:$true] %s148
      %151 = dma.vmem_to_hbm [thread:$0]  %s149, 128, %s6, [#allocation3]
    $region29: #{tpu_custom_call.1} parent=1 // pred_fallthru
      _
    // Predicated region
    $region30: #{tpu_custom_call.1} parent=1 // pred_check
      _
    $region31: #{tpu_custom_call.1} parent=1 // pred_check_branch
      %153 = sbr.rel (0) target = $region33
    $region32: #{tpu_custom_call.1} parent=1 // pred_region
      %154 = dma.done [#allocation3], 128
    $region33: #{tpu_custom_call.1} parent=1 // pred_fallthru
      _
    %155 = vsyncpa [#allocation3], 1

</llo_original>
